<compile_context>
chip_gen: v6e
topology: v6e:2x2x1
jax: 0.10.0
libtpu: 0.0.40
codegen_flags: <defaults>
</compile_context>

<pallas_src>
import functools

import jax
import jax.numpy as jnp
from jax.experimental import pallas as pl
from jax.experimental.pallas import tpu as pltpu

_LANE = 128
_SUBLANE = 8
# Working-set budget for one kernel instance; 32 MiB (+16 MiB scoped headroom)
# fits every generation, including v7x's 64 MiB physical VMEM.
_VMEM_BUDGET_BYTES = 32 * 1024 * 1024
_VMEM_LIMIT_BYTES = 48 * 1024 * 1024


def _round_up(x, m):
    return (x + m - 1) // m * m


def mlp_kernel(x_ref, w1_ref, b1_ref, w2_ref, b2_ref, o_ref):
    # Layer 1: Linear (bf16 MXU matmul, f32 accumulate) + bias + tanh (f32).
    x = x_ref[...].astype(w1_ref.dtype)
    h = jnp.dot(x, w1_ref[...], preferred_element_type=jnp.float32)
    h = jnp.tanh(h + b1_ref[...])
    # Layer 2: Linear + bias + tanh.
    y = jnp.dot(h.astype(w2_ref.dtype), w2_ref[...],
                preferred_element_type=jnp.float32)
    y = jnp.tanh(y + b2_ref[...])
    # Final sigmoid (matches torch.sigmoid of the activated last layer).
    o_ref[...] = jax.nn.sigmoid(y).astype(o_ref.dtype)


def prepare_params(w1, b1, w2, b2, *, compute_dtype=jnp.bfloat16):
    """Pad/cast the weights ONCE, outside the per-forward-call path.

    Only the hidden dim is padded to a lane multiple (exact: padded hidden
    units see bias 0 -> tanh(0)=0 and their W2 rows are zero).  d_in / d_out
    stay un-padded so x and the output need no per-call pad/slice copies.
    Weights are cast to `compute_dtype` (bf16 by default) for full MXU rate
    and half the weight HBM/VMEM bytes; biases stay f32.
    """
    d_in, d_hid = w1.shape
    d_out = w2.shape[1]
    d_hid_p = _round_up(d_hid, _LANE)
    w1_p = jnp.pad(w1, ((0, 0), (0, d_hid_p - d_hid))).astype(compute_dtype)
    b1_p = jnp.pad(jnp.reshape(b1, (1, d_hid)),
                   ((0, 0), (0, d_hid_p - d_hid))).astype(jnp.float32)
    w2_p = jnp.pad(w2, ((0, d_hid_p - d_hid), (0, 0))).astype(compute_dtype)
    b2_p = jnp.reshape(b2, (1, d_out)).astype(jnp.float32)
    return w1_p, b1_p, w2_p, b2_p


def _pick_block_n(n_p, d_in, d_hid_p, d_out, x_bytes, w_bytes, requested):
    """Largest batch tile whose working set stays under the VMEM budget."""
    # Weights/biases are block-constant; assume default double-buffering.
    weight_bytes = 2 * (d_in * d_hid_p + d_hid_p * d_out) * w_bytes
    weight_bytes += 2 * (d_hid_p + d_out) * 4
    # Per batch-row: x tile (2x buffered), out tile (2x), f32 hidden + y temps.
    per_row = (2 * d_in * x_bytes + 2 * d_out * x_bytes
               + d_hid_p * 4 + d_out * 4)
    avail = max(_VMEM_BUDGET_BYTES - weight_bytes, 0)
    block_n = min(requested, max(avail // per_row, _SUBLANE), n_p)
    # On big batches keep >= 2 grid steps so the "parallel" batch axis can be
    # sharded across the 2 TensorCores of a v7x megacore.
    if n_p >= 2 * _LANE:
        block_n = min(block_n, _round_up(pl.cdiv(n_p, 2), _SUBLANE))
    return max(_SUBLANE, block_n // _SUBLANE * _SUBLANE)


@functools.partial(jax.jit, static_argnames=("block_n",))
def mlp_forward(x, w1_p, b1_p, w2_p, b2_p, *, block_n=512):
    """Fused MLP forward.  Weights/biases must come from prepare_params()."""
    n, d_in = x.shape
    d_hid_p = w1_p.shape[1]
    d_out = w2_p.shape[1]

    # Batch only rounded up to the sublane (<= 7 pad rows); pl.cdiv grid keeps
    # ragged batches from rounding up to a whole extra tile of work.
    n_p = _round_up(n, _SUBLANE)
    if n_p != n:
        x = jnp.pad(x, ((0, n_p - n), (0, 0)))

    block_n_eff = _pick_block_n(n_p, d_in, d_hid_p, d_out,
                                x.dtype.itemsize, w1_p.dtype.itemsize, block_n)
    grid = (pl.cdiv(n_p, block_n_eff),)

    # TODO(synk): for very large hidden dims (W1/W2 not VMEM-resident even in
    # bf16) add a second "arbitrary" grid axis tiling d_hid with a VMEM
    # accumulator; not needed at these sizes.

    cost = pl.CostEstimate(
        flops=2 * n_p * (d_in * d_hid_p + d_hid_p * d_out),
        transcendentals=n_p * (d_hid_p + 2 * d_out),
        bytes_accessed=(x.size * x.dtype.itemsize
                        + (w1_p.size + w2_p.size) * w1_p.dtype.itemsize
                        + (b1_p.size + b2_p.size) * 4
                        + n_p * d_out * x.dtype.itemsize),
    )

    out = pl.pallas_call(
        mlp_kernel,
        out_shape=jax.ShapeDtypeStruct((n_p, d_out), x.dtype),
        grid_spec=pltpu.PrefetchScalarGridSpec(
            num_scalar_prefetch=0,
            grid=grid,
            in_specs=[
                # batch-tiled activations (d_in is a full-extent block)
                pl.BlockSpec((block_n_eff, d_in), lambda i: (i, 0)),
                # weights / biases: full-array blocks, constant across the grid
                pl.BlockSpec((d_in, d_hid_p), lambda i: (0, 0)),
                pl.BlockSpec((1, d_hid_p), lambda i: (0, 0)),
                pl.BlockSpec((d_hid_p, d_out), lambda i: (0, 0)),
                pl.BlockSpec((1, d_out), lambda i: (0, 0)),
            ],
            out_specs=pl.BlockSpec((block_n_eff, d_out), lambda i: (i, 0)),
        ),
        compiler_params=pltpu.CompilerParams(
            dimension_semantics=("parallel",),   # batch axis: megacore-shardable
            vmem_limit_bytes=_VMEM_LIMIT_BYTES,
        ),
        cost_estimate=cost,
    )(x, w1_p, b1_p, w2_p, b2_p)

    return out if n_p == n else out[:n]


def init_linear(key, fan_in, fan_out, dtype=jnp.float32):
    """nn.Linear-style init (uniform +-1/sqrt(fan_in)); W stored (fan_in, fan_out)."""
    kw, kb = jax.random.split(key)
    bound = 1.0 / (fan_in ** 0.5)
    w = jax.random.uniform(kw, (fan_in, fan_out), dtype, minval=-bound, maxval=bound)
    b = jax.random.uniform(kb, (fan_out,), dtype, minval=-bound, maxval=bound)
    return w, b


def mlp_reference(x, w1, b1, w2, b2, compute_dtype=jnp.float32):
    h = jnp.tanh(jnp.dot(x.astype(compute_dtype), w1.astype(compute_dtype),
                         preferred_element_type=jnp.float32) + jnp.reshape(b1, (1, -1)))
    y = jnp.tanh(jnp.dot(h.astype(compute_dtype), w2.astype(compute_dtype),
                         preferred_element_type=jnp.float32) + jnp.reshape(b2, (1, -1)))
    return jax.nn.sigmoid(y)


if __name__ == "__main__":
    # Shapes implied by MLPModule(input_dim, hidden_dim, output_dim, num_layers=2)
    batch, input_dim, hidden_dim, output_dim = 16, 16, 32, 8

    key = jax.random.PRNGKey(0)
    kx, k1, k2 = jax.random.split(key, 3)
    x = jax.random.normal(kx, (batch, input_dim), jnp.float32)
    w1, b1 = init_linear(k1, input_dim, hidden_dim)
    w2, b2 = init_linear(k2, hidden_dim, output_dim)

    # Pad/cast the weights ONCE (bf16 for the MXU), then run the fused kernel.
    params = prepare_params(w1, b1, w2, b2, compute_dtype=jnp.bfloat16)
    out = jax.block_until_ready(mlp_forward(x, *params))
    assert out.shape == (batch, output_dim)

    # Matched-precision (bf16 matmul) reference: tight tolerance.
    ref_bf16 = mlp_reference(x, w1, b1, w2, b2, compute_dtype=jnp.bfloat16)
    assert jnp.allclose(out, ref_bf16, atol=5e-3, rtol=5e-3), \
        float(jnp.max(jnp.abs(out - ref_bf16)))
    # Full-f32 reference: loose tolerance bounds bf16 quantization error.
    ref_f32 = mlp_reference(x, w1, b1, w2, b2, compute_dtype=jnp.float32)
    assert jnp.allclose(out, ref_f32, atol=2e-2, rtol=2e-2), \
        float(jnp.max(jnp.abs(out - ref_f32)))

    print("KERNEL_OK")
</pallas_src>

<mosaic_0001>
module attributes {stable_mosaic.version = 11 : i64} {
  func.func @mlp_kernel(%arg0: i32, %arg1: memref<16x16xf32, #tpu.memory_space<vmem>>, %arg2: memref<16x128xbf16, #tpu.memory_space<vmem>>, %arg3: memref<1x128xf32, #tpu.memory_space<vmem>>, %arg4: memref<128x8xbf16, #tpu.memory_space<vmem>>, %arg5: memref<1x8xf32, #tpu.memory_space<vmem>>, %arg6: memref<16x8xf32, #tpu.memory_space<vmem>>) attributes {dimension_semantics = [#tpu.dimension_semantics<parallel>], iteration_bounds = array<i64: 1>, scalar_prefetch = 0 : i64, scratch_operands = 0 : i64, tpu.core_type = #tpu.core_type<tc>, window_params = [{transform_indices = @transform_0, window_bounds = array<i64: 16, 16>}, {pipeline_mode = #tpu.pipeline_mode<synchronous>, transform_indices = @transform_1, window_bounds = array<i64: 16, 128>}, {pipeline_mode = #tpu.pipeline_mode<synchronous>, transform_indices = @transform_2, window_bounds = array<i64: 1, 128>}, {pipeline_mode = #tpu.pipeline_mode<synchronous>, transform_indices = @transform_3, window_bounds = array<i64: 128, 8>}, {pipeline_mode = #tpu.pipeline_mode<synchronous>, transform_indices = @transform_4, window_bounds = array<i64: 1, 8>}, {transform_indices = @transform_5, window_bounds = array<i64: 16, 8>}]} {
    %c0 = arith.constant 0 : index
    %c0_0 = arith.constant 0 : index
    %0 = vector.load %arg1[%c0, %c0_0] : memref<16x16xf32, #tpu.memory_space<vmem>>, vector<16x16xf32>
    %1 = arith.truncf %0 : vector<16x16xf32> to vector<16x16xbf16>
    %c0_1 = arith.constant 0 : index
    %c0_2 = arith.constant 0 : index
    %2 = vector.load %arg2[%c0_1, %c0_2] : memref<16x128xbf16, #tpu.memory_space<vmem>>, vector<16x128xbf16>
    %cst = arith.constant dense<0.000000e+00> : vector<16x128xf32>
    %3 = tpu.matmul %1, %2, %cst {dimension_numbers = #tpu.dot_dimension_numbers<[1], [0], [0], [1], [0, 0, 1, 1], [], []>} : vector<16x16xbf16>, vector<16x128xbf16>, vector<16x128xf32> -> vector<16x128xf32>
    %c0_3 = arith.constant 0 : index
    %c0_4 = arith.constant 0 : index
    %4 = vector.load %arg3[%c0_3, %c0_4] : memref<1x128xf32, #tpu.memory_space<vmem>>, vector<1x128xf32>
    %5 = vector.broadcast %4 : vector<1x128xf32> to vector<16x128xf32>
    %6 = arith.addf %3, %5 : vector<16x128xf32>
    %7 = math.tanh %6 : vector<16x128xf32>
    %8 = arith.truncf %7 : vector<16x128xf32> to vector<16x128xbf16>
    %c0_5 = arith.constant 0 : index
    %c0_6 = arith.constant 0 : index
    %9 = vector.load %arg4[%c0_5, %c0_6] : memref<128x8xbf16, #tpu.memory_space<vmem>>, vector<128x8xbf16>
    %cst_7 = arith.constant dense<0.000000e+00> : vector<16x8xf32>
    %10 = tpu.matmul %8, %9, %cst_7 {dimension_numbers = #tpu.dot_dimension_numbers<[1], [0], [0], [1], [0, 0, 1, 1], [], []>} : vector<16x128xbf16>, vector<128x8xbf16>, vector<16x8xf32> -> vector<16x8xf32>
    %c0_8 = arith.constant 0 : index
    %c0_9 = arith.constant 0 : index
    %11 = vector.load %arg5[%c0_8, %c0_9] : memref<1x8xf32, #tpu.memory_space<vmem>>, vector<1x8xf32>
    %12 = vector.broadcast %11 : vector<1x8xf32> to vector<16x8xf32>
    %13 = arith.addf %10, %12 : vector<16x8xf32>
    %14 = math.tanh %13 : vector<16x8xf32>
    %15 = arith.negf %14 : vector<16x8xf32>
    %16 = math.exp %15 : vector<16x8xf32>
    %cst_10 = arith.constant 1.000000e+00 : f32
    %17 = vector.broadcast %cst_10 : f32 to vector<16x8xf32>
    %18 = arith.addf %17, %16 : vector<16x8xf32>
    %19 = arith.divf %17, %18 : vector<16x8xf32>
    %c0_11 = arith.constant 0 : index
    %c0_12 = arith.constant 0 : index
    %20 = vector.load %arg6[%c0_11, %c0_12] : memref<16x8xf32, #tpu.memory_space<vmem>>, vector<16x8xf32>
    tpu.vector_store %arg6[%c0_11, %c0_12], %19 {strides = array<i32>} : memref<16x8xf32, #tpu.memory_space<vmem>>, vector<16x8xf32>,
    return
  }
  func.func @transform_0(%arg0: i32) -> (i32, i32) {
    %c0_i32 = arith.constant 0 : i32
    %c0_i32_0 = arith.constant 0 : i32
    return %arg0, %c0_i32 : i32, i32
  }
  func.func @transform_1(%arg0: i32) -> (i32, i32) {
    %c0_i32 = arith.constant 0 : i32
    %c0_i32_0 = arith.constant 0 : i32
    %c0_i32_1 = arith.constant 0 : i32
    return %c0_i32, %c0_i32_0 : i32, i32
  }
  func.func @transform_2(%arg0: i32) -> (i32, i32) {
    %c0_i32 = arith.constant 0 : i32
    %c0_i32_0 = arith.constant 0 : i32
    %c0_i32_1 = arith.constant 0 : i32
    return %c0_i32, %c0_i32_0 : i32, i32
  }
  func.func @transform_3(%arg0: i32) -> (i32, i32) {
    %c0_i32 = arith.constant 0 : i32
    %c0_i32_0 = arith.constant 0 : i32
    %c0_i32_1 = arith.constant 0 : i32
    return %c0_i32, %c0_i32_0 : i32, i32
  }
  func.func @transform_4(%arg0: i32) -> (i32, i32) {
    %c0_i32 = arith.constant 0 : i32
    %c0_i32_0 = arith.constant 0 : i32
    %c0_i32_1 = arith.constant 0 : i32
    return %c0_i32, %c0_i32_0 : i32, i32
  }
  func.func @transform_5(%arg0: i32) -> (i32, i32) {
    %c0_i32 = arith.constant 0 : i32
    %c0_i32_0 = arith.constant 0 : i32
    return %arg0, %c0_i32 : i32, i32
  }
}

</mosaic_0001>

<llo_original>
// kernel: mlp_forward.1
$region0: #{mlp_forward.1}
  #allocation0 [shape = 'u32[]', space=smem, size = 0x4, offset = 0x4, fixed_abs, tag = 'smem constant byte address 0x4 - core index']
  #allocation1 [shape = 'u32[144,128]{1,0:T(1,128)}', space=vmem, size = 0x12000, scoped, tag = 'internal scratch']
  %s0 = inlined_call_operand.vmem [shape: f32[16,16], index: 0, kind: input, shape index: {}]
  %s1 = inlined_call_operand.vmem [shape: bf16[16,128], index: 1, kind: input, shape index: {}]
  %s2 = inlined_call_operand.vmem [shape: f32[1,128], index: 2, kind: input, shape index: {}]
  %s3 = inlined_call_operand.vmem [shape: bf16[128,8], index: 3, kind: input, shape index: {}]
  %s4 = inlined_call_operand.vmem [shape: f32[1,8], index: 4, kind: input, shape index: {}]
  %s5 = inlined_call_operand.vmem [shape: f32[16,8], index: 5, kind: output, shape index: {}]
  %s6 = sld [smem:[#allocation0]]
  $region30: #{mlp_forward.1} parent=0
    _
  %s8 = ssub.s32 1, %s6
  %s9 = scalar_select 0, %s8, %s6
  // Predicated region
  $region2: #{mlp_forward.1} parent=0 // pred_check
    _
  $region3: #{mlp_forward.1} parent=0 // pred_check_branch
    %11 = sbr.rel (0) target = $region5
  $region4: #{mlp_forward.1} parent=0 // pred_region
    _
  $region5: #{mlp_forward.1} parent=0 // pred_fallthru
    _
  // Predicated region
  $region6: #{mlp_forward.1} parent=0 // pred_check
    _
  $region7: #{mlp_forward.1} parent=0 // pred_check_branch
    %13 = sbr.rel (0) target = $region9
  $region8: #{mlp_forward.1} parent=0 // pred_region
    _
  $region9: #{mlp_forward.1} parent=0 // pred_fallthru
    _
  // Predicated region
  $region10: #{mlp_forward.1} parent=0 // pred_check
    _
  $region11: #{mlp_forward.1} parent=0 // pred_check_branch
    %15 = sbr.rel (0) target = $region13
  $region12: #{mlp_forward.1} parent=0 // pred_region
    _
  $region13: #{mlp_forward.1} parent=0 // pred_fallthru
    _
  // Predicated region
  $region14: #{mlp_forward.1} parent=0 // pred_check
    _
  $region15: #{mlp_forward.1} parent=0 // pred_check_branch
    %17 = sbr.rel (0) target = $region17
  $region16: #{mlp_forward.1} parent=0 // pred_region
    _
  $region17: #{mlp_forward.1} parent=0 // pred_fallthru
    _
  // Predicated region
  $region18: #{mlp_forward.1} parent=0 // pred_check
    _
  $region19: #{mlp_forward.1} parent=0 // pred_check_branch
    %19 = sbr.rel (0) target = $region21
  $region20: #{mlp_forward.1} parent=0 // pred_region
    _
  $region21: #{mlp_forward.1} parent=0 // pred_fallthru
    _
  %v21 = vld [vmem:[%s0] sm:$0xff]
  %v22 = vld [vmem:[%s0 + $0x8] sm:$0xff]
  %v23 = vpack.c.bf16 %v22, %v21
  %v24 = vld [vmem:[%s1] sm:$0xf]
  %v25 = vld [vmem:[%s1 + $0x4] sm:$0xf]
  %v26 = vld [vmem:[%s2] sm:$0x1]
  %v28 = vlaneseq
  %v29 = vshrl.u32 %v28, 7
  %v30 = vsub.s32 0, %v29
  %v31 = vrot.slane %v26, %v30
  %v35 = vunpack.c.l.b16 %v24
  %v36 = vunpack.c.l.b16 %v25
  %v37 = vpack.c.b16 %v36, %v35
  %vm39 = vcmask 130048
  %v41 = vsel %vm39, %v23, 0
  %43 = vmatprep.subr.bf16.mxu0 0
  %44 = vmatpush1.bf16.msra.mxu0 0
  %45 = vmatprep.subr.bf16.mxu0 0
  %46 = vmatpush1.bf16.msra.mxu0 0
  %47 = vmatprep.subr.bf16.mxu0 0
  %48 = vmatpush1.bf16.msra.mxu0 0
  %49 = vmatprep.subr.bf16.mxu0 0
  %50 = vmatpush1.bf16.msra.mxu0 0
  %51 = vmatprep.subr.bf16.mxu0 0
  %52 = vmatpush1.bf16.msra.mxu0 0
  %53 = vmatprep.subr.bf16.mxu0 0
  %54 = vmatpush1.bf16.msra.mxu0 0
  %55 = vmatprep.subr.bf16.mxu0 0
  %56 = vmatpush1.bf16.msra.mxu0 0
  %57 = vmatprep.subr.bf16.mxu0 0
  %58 = vmatpush1.bf16.msra.mxu0 %v37
  %59 = vmatprep.subr.bf16.mxu0 0
  %60 = vmatpush2.bf16.msra.mxu0 0
  %61 = vmatprep.subr.bf16.mxu0 0
  %62 = vmatpush2.bf16.msra.mxu0 0
  %63 = vmatprep.subr.bf16.mxu0 0
  %64 = vmatpush2.bf16.msra.mxu0 0
  %65 = vmatprep.subr.bf16.mxu0 0
  %66 = vmatpush2.bf16.msra.mxu0 0
  %67 = vmatprep.subr.bf16.mxu0 0
  %68 = vmatpush2.bf16.msra.mxu0 0
  %69 = vmatprep.subr.bf16.mxu0 0
  %70 = vmatpush2.bf16.msra.mxu0 0
  %71 = vmatprep.subr.bf16.mxu0 0
  %72 = vmatpush2.bf16.msra.mxu0 0
  %73 = vmatprep.subr.bf16.mxu0 0
  %74 = vmatpush2.bf16.msra.mxu0 0
  %75 = vmatprep.mubr.bf16.mxu0 0
  %76 = vmatmul.mubr.bf16.gmra.mxu0 %v41
  %v77 = vpop.f32.mrf.mxu0
  %v78 = vadd.f32 %v31, %v77
  %v79 = vpop.f32.mrf.mxu0
  %v80 = vpop.f32.mrf.mxu0
  %v81 = vadd.f32 %v31, %v80
  %v82 = vpop.f32.mrf.mxu0
  %83 = vdwg.mxu0
  %v84 = vtanh.pop %v78
  %v85 = vtanh.pop %v81
  %v86 = vpack.c.bf16 %v85, %v84
  %v87 = vld [vmem:[%s3] sm:$0xf]
  %v88 = vld [vmem:[%s3 + $0x4] sm:$0xf]
  %v89 = vld [vmem:[%s3 + $0x8] sm:$0xf]
  %v90 = vld [vmem:[%s3 + $0xc] sm:$0xf]
  %v91 = vld [vmem:[%s3 + $0x10] sm:$0xf]
  %v92 = vld [vmem:[%s3 + $0x14] sm:$0xf]
  %v93 = vld [vmem:[%s3 + $0x18] sm:$0xf]
  %v94 = vld [vmem:[%s3 + $0x1c] sm:$0xf]
  %v95 = vld [vmem:[%s3 + $0x20] sm:$0xf]
  %v96 = vld [vmem:[%s3 + $0x24] sm:$0xf]
  %v97 = vld [vmem:[%s3 + $0x28] sm:$0xf]
  %v98 = vld [vmem:[%s3 + $0x2c] sm:$0xf]
  %v99 = vld [vmem:[%s3 + $0x30] sm:$0xf]
  %v100 = vld [vmem:[%s3 + $0x34] sm:$0xf]
  %v101 = vld [vmem:[%s3 + $0x38] sm:$0xf]
  %v102 = vld [vmem:[%s3 + $0x3c] sm:$0xf]
  %v103 = vld [vmem:[%s4] sm:$0x1]
  %v105 = vlaneseq
  %v106 = vshrl.u32 %v105, 7
  %v107 = vsub.s32 0, %v106
  %v108 = vrot.slane %v103, %v107
  %v126 = vunpack.c.l.b16 %v87
  %v127 = vunpack.c.l.b16 %v88
  %v128 = vunpack.c.l.b16 %v89
  %v129 = vunpack.c.l.b16 %v90
  %v130 = vunpack.c.l.b16 %v91
  %v131 = vunpack.c.l.b16 %v92
  %v132 = vunpack.c.l.b16 %v93
  %v133 = vunpack.c.l.b16 %v94
  %v134 = vunpack.c.l.b16 %v95
  %v135 = vunpack.c.l.b16 %v96
  %v136 = vunpack.c.l.b16 %v97
  %v137 = vunpack.c.l.b16 %v98
  %v138 = vunpack.c.l.b16 %v99
  %v139 = vunpack.c.l.b16 %v100
  %v140 = vunpack.c.l.b16 %v101
  %v141 = vunpack.c.l.b16 %v102
  %v142 = vpack.c.b16 %v127, %v126
  %v143 = vpack.c.b16 %v129, %v128
  %v144 = vpack.c.b16 %v131, %v130
  %v145 = vpack.c.b16 %v133, %v132
  %v146 = vpack.c.b16 %v135, %v134
  %v147 = vpack.c.b16 %v137, %v136
  %v148 = vpack.c.b16 %v139, %v138
  %v149 = vpack.c.b16 %v141, %v140
  %158 = vmatprep.subr.bf16.mxu0 0
  %159 = vmatpush1.bf16.msra.mxu0 %v149
  %160 = vmatprep.subr.bf16.mxu0 0
  %161 = vmatpush1.bf16.msra.mxu0 %v148
  %162 = vmatprep.subr.bf16.mxu0 0
  %163 = vmatpush1.bf16.msra.mxu0 %v147
  %164 = vmatprep.subr.bf16.mxu0 0
  %165 = vmatpush1.bf16.msra.mxu0 %v146
  %166 = vmatprep.subr.bf16.mxu0 0
  %167 = vmatpush1.bf16.msra.mxu0 %v145
  %168 = vmatprep.subr.bf16.mxu0 0
  %169 = vmatpush1.bf16.msra.mxu0 %v144
  %170 = vmatprep.subr.bf16.mxu0 0
  %171 = vmatpush1.bf16.msra.mxu0 %v143
  %172 = vmatprep.subr.bf16.mxu0 0
  %173 = vmatpush1.bf16.msra.mxu0 %v142
  %174 = vmatprep.subr.bf16.mxu0 0
  %175 = vmatpush2.bf16.msra.mxu0 0
  %176 = vmatprep.subr.bf16.mxu0 0
  %177 = vmatpush2.bf16.msra.mxu0 0
  %178 = vmatprep.subr.bf16.mxu0 0
  %179 = vmatpush2.bf16.msra.mxu0 0
  %180 = vmatprep.subr.bf16.mxu0 0
  %181 = vmatpush2.bf16.msra.mxu0 0
  %182 = vmatprep.subr.bf16.mxu0 0
  %183 = vmatpush2.bf16.msra.mxu0 0
  %184 = vmatprep.subr.bf16.mxu0 0
  %185 = vmatpush2.bf16.msra.mxu0 0
  %186 = vmatprep.subr.bf16.mxu0 0
  %187 = vmatpush2.bf16.msra.mxu0 0
  %188 = vmatprep.subr.bf16.mxu0 0
  %189 = vmatpush2.bf16.msra.mxu0 0
  %190 = vmatprep.mubr.bf16.mxu0 0
  %191 = vmatmul.mubr.bf16.gmra.mxu0 %v86
  %v192 = vpop.f32.mrf.mxu0
  %v193 = vadd.f32 %v108, %v192
  %v194 = vpop.f32.mrf.mxu0
  %v195 = vpop.f32.mrf.mxu0
  %v196 = vadd.f32 %v108, %v195
  %v197 = vpop.f32.mrf.mxu0
  %198 = vdwg.mxu0
  %v199 = vtanh.pop %v193
  %v200 = vtanh.pop %v196
  %v201 = vxor.u32 %v199, 2147483648
  %v202 = vxor.u32 %v200, 2147483648
  %v203 = vmul.f32 %v201, 1.442695
  %v204 = vpow.pop %v203
  %v205 = vmul.f32 %v202, 1.442695
  %v206 = vpow.pop %v205
  %v207 = vadd.f32 %v204, 1.0
  %v208 = vadd.f32 %v206, 1.0
  %v209 = vrcp.pop %v207
  %v210 = vmul.f32 1.0, %v209
  %v211 = vrcp.pop %v208
  %v212 = vmul.f32 1.0, %v211
  %vm213 = vcmask 64512
  %214 = vst.msk [vmem:[%s5] sm:$0xff] %vm213, %v210
  %215 = vst.msk [vmem:[%s5 + $0x8] sm:$0xff] %vm213, %v212
  // Predicated region
  $region22: #{mlp_forward.1} parent=0 // pred_check
    _
  $region23: #{mlp_forward.1} parent=0 // pred_check_branch
    %217 = sbr.rel (0) target = $region25
  $region24: #{mlp_forward.1} parent=0 // pred_region
    _
  $region25: #{mlp_forward.1} parent=0 // pred_fallthru
    _
  // Predicated region
  $region26: #{mlp_forward.1} parent=0 // pred_check
    _
  $region27: #{mlp_forward.1} parent=0 // pred_check_branch
    %219 = sbr.rel (0) target = $region29
  $region28: #{mlp_forward.1} parent=0 // pred_region
    _
  $region29: #{mlp_forward.1} parent=0 // pred_fallthru
    _

</llo_original>
